<compile_context>
chip_gen: v7x
topology: tpu7x:2x2x1
jax: 0.10.0
libtpu: 0.0.40
codegen_flags: <defaults>
</compile_context>

<pallas_src>
import functools

import jax
import jax.numpy as jnp
from jax import lax
from jax.experimental import pallas as pl
from jax.experimental.pallas import tpu as pltpu


def _bert_embedding_kernel(
    # scalar-prefetch refs (SMEM), flattened ids padded to N_pad rows
    tok_ids_ref,    # (N_pad,) int32
    pos_ids_ref,    # (N_pad,) int32
    typ_ids_ref,    # (N_pad,) int32
    # HBM-resident embedding tables (no automatic DMA)
    tok_tab_ref,    # (Vt, D) f32   memory_space=pl.ANY
    pos_tab_ref,    # (Vp, D) f32   memory_space=pl.ANY
    typ_tab_ref,    # (Vy, D) f32   memory_space=pl.ANY
    # small VMEM operands
    gamma_ref,      # (1, D) f32
    beta_ref,       # (1, D) f32
    # output block
    out_ref,        # (R, D) f32
    # scratch
    tok_buf,        # (R, D) f32 VMEM
    pos_buf,        # (R, D) f32 VMEM
    typ_buf,        # (R, D) f32 VMEM
    sems,           # DMA semaphores, shape (3,)
    *,
    eps: float,
    block_rows: int,
):
    base = pl.program_id(0) * block_rows

    def start_row_gather(ids_ref, tab_hbm, buf, sem):
        @pl.loop(0, block_rows)
        def _(r):
            row = ids_ref[base + r]
            pltpu.make_async_copy(
                tab_hbm.at[pl.ds(row, 1)],   # one (1, D) row from HBM
                buf.at[pl.ds(r, 1)],         # into row r of VMEM scratch
                sem,
            ).start()

    def wait_row_gather(tab_hbm, buf, sem):
        @pl.loop(0, block_rows)
        def _(r):
            pltpu.make_async_copy(
                tab_hbm.at[pl.ds(0, 1)],     # shape-only descriptor for wait
                buf.at[pl.ds(r, 1)],
                sem,
            ).wait()

    # Issue every row DMA of all three gathers first so they overlap in the
    # DMA engine, then wait for completion.
    start_row_gather(tok_ids_ref, tok_tab_ref, tok_buf, sems.at[0])
    start_row_gather(pos_ids_ref, pos_tab_ref, pos_buf, sems.at[1])
    start_row_gather(typ_ids_ref, typ_tab_ref, typ_buf, sems.at[2])
    wait_row_gather(tok_tab_ref, tok_buf, sems.at[0])
    wait_row_gather(pos_tab_ref, pos_buf, sems.at[1])
    wait_row_gather(typ_tab_ref, typ_buf, sems.at[2])

    # Sum of embeddings + LayerNorm over D (biased variance, like torch).
    e = tok_buf[...] + pos_buf[...] + typ_buf[...]            # (R, D) f32
    mean = jnp.mean(e, axis=-1, keepdims=True)
    centered = e - mean
    var = jnp.mean(centered * centered, axis=-1, keepdims=True)
    normed = centered * lax.rsqrt(var + eps)
    y = normed * gamma_ref[...] + beta_ref[...]               # (R, D)

    # Dropout: identity at inference time.
    # TODO(synk): training-mode dropout would use pltpu.prng_seed / prng_random_bits.
    out_ref[...] = y.astype(out_ref.dtype)


def _round_up(x, m):
    return (x + m - 1) // m * m


def bert_embedding(
    inputs,                     # (B, S) int32 token ids
    position_ids=None,          # (B, S) int32 or None (defaults to arange)
    token_type_ids=None,        # (B, S) int32 or None (defaults to zeros)
    *,
    token_table,                # (n_tokens, D) f32
    position_table,             # (max_seq_len, D) f32
    type_table,                 # (n_token_types, D) f32
    gamma,                      # (D,) f32
    beta,                       # (D,) f32
    eps,
    max_block_rows=256,
):
    B, S = inputs.shape
    D = token_table.shape[1]

    if position_ids is None:
        position_ids = jnp.broadcast_to(
            jnp.arange(S, dtype=jnp.int32)[None, :], (B, S))
    if token_type_ids is None:
        token_type_ids = jnp.zeros((B, S), jnp.int32)

    N = B * S
    R = min(max_block_rows, _round_up(N, 8))   # rows per grid step (mult. of 8)
    N_pad = _round_up(N, R)
    grid = (N_pad // R,)

    def _flat_ids(ids):
        flat = ids.reshape(N).astype(jnp.int32)
        # Pad with id 0 (a valid row) so padded rows never trigger OOB DMAs.
        return jnp.pad(flat, (0, N_pad - N))

    tok_ids = _flat_ids(inputs)
    pos_ids = _flat_ids(position_ids)
    typ_ids = _flat_ids(token_type_ids)

    tok_tab = token_table.astype(jnp.float32)
    pos_tab = position_table.astype(jnp.float32)
    typ_tab = type_table.astype(jnp.float32)
    gamma2 = gamma.reshape(1, D).astype(jnp.float32)
    beta2 = beta.reshape(1, D).astype(jnp.float32)

    kernel = functools.partial(
        _bert_embedding_kernel, eps=float(eps), block_rows=R)

    # index_maps receive the scalar-prefetch refs as trailing positional args.
    const_map = lambda i, tok, pos, typ: (0, 0)
    row_map = lambda i, tok, pos, typ: (i, 0)

    out_flat = pl.pallas_call(
        kernel,
        out_shape=jax.ShapeDtypeStruct((N_pad, D), jnp.float32),
        grid_spec=pltpu.PrefetchScalarGridSpec(
            num_scalar_prefetch=3,
            grid=grid,
            in_specs=[
                pl.BlockSpec(memory_space=pl.ANY),   # token table: stays in HBM
                pl.BlockSpec(memory_space=pl.ANY),   # position table: stays in HBM
                pl.BlockSpec(memory_space=pl.ANY),   # type table: stays in HBM
                pl.BlockSpec((1, D), const_map),     # gamma (fetched once)
                pl.BlockSpec((1, D), const_map),     # beta  (fetched once)
            ],
            out_specs=pl.BlockSpec((R, D), row_map),
            scratch_shapes=[
                pltpu.VMEM((R, D), jnp.float32),     # gathered token rows
                pltpu.VMEM((R, D), jnp.float32),     # gathered position rows
                pltpu.VMEM((R, D), jnp.float32),     # gathered type rows
                pltpu.SemaphoreType.DMA((3,)),       # one sem per gather stream
            ],
        ),
        compiler_params=pltpu.CompilerParams(
            dimension_semantics=("parallel",),       # row blocks are independent
        ),
        cost_estimate=pl.CostEstimate(
            flops=int(11 * N_pad * D),
            transcendentals=int(N_pad),
            bytes_accessed=int(4 * N_pad * D * 4 + 3 * N_pad * 4),
        ),
    )(tok_ids, pos_ids, typ_ids, tok_tab, pos_tab, typ_tab, gamma2, beta2)

    return out_flat[:N].reshape(B, S, D)


def _reference(inputs, position_ids, token_type_ids,
               token_table, position_table, type_table, gamma, beta, eps):
    tok = token_table[inputs]
    pos = position_table[position_ids]
    typ = type_table[token_type_ids]
    e = tok + pos + typ
    mean = jnp.mean(e, axis=-1, keepdims=True)
    var = jnp.mean((e - mean) ** 2, axis=-1, keepdims=True)
    return (e - mean) * lax.rsqrt(var + eps) * gamma + beta


if __name__ == "__main__":
    # Module hyper-parameters (small, consistent with BERTEmbedding.__init__).
    n_tokens = 64
    token_dim = 32
    max_seq_len = 16
    n_token_types = 2
    pad_token_id = 0
    layer_norm_eps = 1e-12
    # hidden_dropout = 0.1  -> identity at inference

    batch, seq_len = 2, 8

    key = jax.random.PRNGKey(0)
    k_tok, k_pos, k_typ, k_ids, k_g, k_b = jax.random.split(key, 6)

    token_table = jax.random.normal(k_tok, (n_tokens, token_dim), jnp.float32) * 0.02
    # nn.Embedding(padding_idx=pad_token_id): the pad row is zero.
    token_table = token_table.at[pad_token_id].set(0.0)
    position_table = jax.random.normal(k_pos, (max_seq_len, token_dim), jnp.float32) * 0.02
    type_table = jax.random.normal(k_typ, (n_token_types, token_dim), jnp.float32) * 0.02
    gamma = 1.0 + 0.1 * jax.random.normal(k_g, (token_dim,), jnp.float32)
    beta = 0.1 * jax.random.normal(k_b, (token_dim,), jnp.float32)

    inputs = jax.random.randint(k_ids, (batch, seq_len), 0, n_tokens, jnp.int32)

    # Use the module's default position / token-type ids (arange / zeros).
    out = bert_embedding(
        inputs,
        token_table=token_table,
        position_table=position_table,
        type_table=type_table,
        gamma=gamma,
        beta=beta,
        eps=layer_norm_eps,
    )
    out = jax.block_until_ready(out)

    position_ids = jnp.broadcast_to(
        jnp.arange(seq_len, dtype=jnp.int32)[None, :], (batch, seq_len))
    token_type_ids = jnp.zeros((batch, seq_len), jnp.int32)
    ref = _reference(
        inputs, position_ids, token_type_ids,
        token_table, position_table, type_table, gamma, beta, layer_norm_eps,
    )

    assert out.shape == (batch, seq_len, token_dim)
    assert jnp.allclose(out, ref, atol=1e-5, rtol=1e-5), "mismatch vs reference"

    print("KERNEL_OK")
</pallas_src>

<mosaic_0001>
module attributes {stable_mosaic.version = 11 : i64} {
  func.func @_bert_embedding_kernel(%arg0: i32, %arg1: memref<16xi32, #tpu.memory_space<smem>>, %arg2: memref<16xi32, #tpu.memory_space<smem>>, %arg3: memref<16xi32, #tpu.memory_space<smem>>, %arg4: memref<64x32xf32, #tpu.memory_space<any>>, %arg5: memref<16x32xf32, #tpu.memory_space<any>>, %arg6: memref<2x32xf32, #tpu.memory_space<any>>, %arg7: memref<1x32xf32, #tpu.memory_space<vmem>>, %arg8: memref<1x32xf32, #tpu.memory_space<vmem>>, %arg9: memref<16x32xf32, #tpu.memory_space<vmem>>, %arg10: memref<16x32xf32, #tpu.memory_space<vmem>>, %arg11: memref<16x32xf32, #tpu.memory_space<vmem>>, %arg12: memref<16x32xf32, #tpu.memory_space<vmem>>, %arg13: memref<3x!tpu.dma_semaphore, #tpu.memory_space<semaphore_mem>>) attributes {dimension_semantics = [#tpu.dimension_semantics<parallel>], iteration_bounds = array<i64: 1>, scalar_prefetch = 3 : i64, scratch_operands = 4 : i64, tpu.core_type = #tpu.core_type<tc>, window_params = [{}, {}, {}, {pipeline_mode = #tpu.pipeline_mode<synchronous>, transform_indices = @transform_3, window_bounds = array<i64: 1, 32>}, {pipeline_mode = #tpu.pipeline_mode<synchronous>, transform_indices = @transform_4, window_bounds = array<i64: 1, 32>}, {transform_indices = @transform_5, window_bounds = array<i64: 16, 32>}]} {
    %c16_i32 = arith.constant 16 : i32
    %0 = arith.muli %arg0, %c16_i32 : i32
    %c0_i32 = arith.constant 0 : i32
    %c0_i32_0 = arith.constant 0 : i32
    %c16_i32_1 = arith.constant 16 : i32
    %1 = arith.addi %c0_i32_0, %c16_i32_1 : i32
    %c1_i32 = arith.constant 1 : i32
    scf.for %arg14 = %c0_i32_0 to %1 step %c1_i32  : i32 {
      %c1_i32_42 = arith.constant 1 : i32
      %35 = arith.muli %arg14, %c1_i32_42 : i32
      %c0_i32_43 = arith.constant 0 : i32
      %36 = arith.addi %c0_i32_43, %35 : i32
      %37 = arith.addi %0, %36 : i32
      %38 = arith.index_cast %37 : i32 to index
      %39 = memref.load %arg1[%38] : memref<16xi32, #tpu.memory_space<smem>>
      %c0_i32_44 = arith.constant 0 : i32
      %40 = tpu.memref_slice %arg4[%39, %c0_i32_44] : memref<64x32xf32, #tpu.memory_space<any>> -> memref<1x32xf32, #tpu.memory_space<any>>
      %c0_i32_45 = arith.constant 0 : i32
      %41 = tpu.memref_slice %arg10[%36, %c0_i32_45] : memref<16x32xf32, #tpu.memory_space<vmem>> -> memref<1x32xf32, #tpu.memory_space<vmem>>
      %42 = tpu.memref_slice %arg13[%c0_i32] : memref<3x!tpu.dma_semaphore, #tpu.memory_space<semaphore_mem>> -> memref<1x!tpu.dma_semaphore, #tpu.memory_space<semaphore_mem>>
      %43 = tpu.memref_squeeze %42 : memref<1x!tpu.dma_semaphore, #tpu.memory_space<semaphore_mem>> -> memref<!tpu.dma_semaphore, #tpu.memory_space<semaphore_mem>>
      tpu.enqueue_dma source(%40 : memref<1x32xf32, #tpu.memory_space<any>>) target(%41 : memref<1x32xf32, #tpu.memory_space<vmem>>) target_semaphore(%43 : memref<!tpu.dma_semaphore, #tpu.memory_space<semaphore_mem>>)
    }
    %c16_i32_2 = arith.constant 16 : i32
    %c1_i32_3 = arith.constant 1 : i32
    %c0_i32_4 = arith.constant 0 : i32
    %c16_i32_5 = arith.constant 16 : i32
    %2 = arith.addi %c0_i32_4, %c16_i32_5 : i32
    %c1_i32_6 = arith.constant 1 : i32
    scf.for %arg14 = %c0_i32_4 to %2 step %c1_i32_6  : i32 {
      %c1_i32_42 = arith.constant 1 : i32
      %35 = arith.muli %arg14, %c1_i32_42 : i32
      %c0_i32_43 = arith.constant 0 : i32
      %36 = arith.addi %c0_i32_43, %35 : i32
      %37 = arith.addi %0, %36 : i32
      %38 = arith.index_cast %37 : i32 to index
      %39 = memref.load %arg2[%38] : memref<16xi32, #tpu.memory_space<smem>>
      %c0_i32_44 = arith.constant 0 : i32
      %40 = tpu.memref_slice %arg5[%39, %c0_i32_44] : memref<16x32xf32, #tpu.memory_space<any>> -> memref<1x32xf32, #tpu.memory_space<any>>
      %c0_i32_45 = arith.constant 0 : i32
      %41 = tpu.memref_slice %arg11[%36, %c0_i32_45] : memref<16x32xf32, #tpu.memory_space<vmem>> -> memref<1x32xf32, #tpu.memory_space<vmem>>
      %42 = tpu.memref_slice %arg13[%c1_i32_3] : memref<3x!tpu.dma_semaphore, #tpu.memory_space<semaphore_mem>> -> memref<1x!tpu.dma_semaphore, #tpu.memory_space<semaphore_mem>>
      %43 = tpu.memref_squeeze %42 : memref<1x!tpu.dma_semaphore, #tpu.memory_space<semaphore_mem>> -> memref<!tpu.dma_semaphore, #tpu.memory_space<semaphore_mem>>
      tpu.enqueue_dma source(%40 : memref<1x32xf32, #tpu.memory_space<any>>) target(%41 : memref<1x32xf32, #tpu.memory_space<vmem>>) target_semaphore(%43 : memref<!tpu.dma_semaphore, #tpu.memory_space<semaphore_mem>>)
    }
    %c16_i32_7 = arith.constant 16 : i32
    %c2_i32 = arith.constant 2 : i32
    %c0_i32_8 = arith.constant 0 : i32
    %c16_i32_9 = arith.constant 16 : i32
    %3 = arith.addi %c0_i32_8, %c16_i32_9 : i32
    %c1_i32_10 = arith.constant 1 : i32
    scf.for %arg14 = %c0_i32_8 to %3 step %c1_i32_10  : i32 {
      %c1_i32_42 = arith.constant 1 : i32
      %35 = arith.muli %arg14, %c1_i32_42 : i32
      %c0_i32_43 = arith.constant 0 : i32
      %36 = arith.addi %c0_i32_43, %35 : i32
      %37 = arith.addi %0, %36 : i32
      %38 = arith.index_cast %37 : i32 to index
      %39 = memref.load %arg3[%38] : memref<16xi32, #tpu.memory_space<smem>>
      %c0_i32_44 = arith.constant 0 : i32
      %40 = tpu.memref_slice %arg6[%39, %c0_i32_44] : memref<2x32xf32, #tpu.memory_space<any>> -> memref<1x32xf32, #tpu.memory_space<any>>
      %c0_i32_45 = arith.constant 0 : i32
      %41 = tpu.memref_slice %arg12[%36, %c0_i32_45] : memref<16x32xf32, #tpu.memory_space<vmem>> -> memref<1x32xf32, #tpu.memory_space<vmem>>
      %42 = tpu.memref_slice %arg13[%c2_i32] : memref<3x!tpu.dma_semaphore, #tpu.memory_space<semaphore_mem>> -> memref<1x!tpu.dma_semaphore, #tpu.memory_space<semaphore_mem>>
      %43 = tpu.memref_squeeze %42 : memref<1x!tpu.dma_semaphore, #tpu.memory_space<semaphore_mem>> -> memref<!tpu.dma_semaphore, #tpu.memory_space<semaphore_mem>>
      tpu.enqueue_dma source(%40 : memref<1x32xf32, #tpu.memory_space<any>>) target(%41 : memref<1x32xf32, #tpu.memory_space<vmem>>) target_semaphore(%43 : memref<!tpu.dma_semaphore, #tpu.memory_space<semaphore_mem>>)
    }
    %c16_i32_11 = arith.constant 16 : i32
    %c0_i32_12 = arith.constant 0 : i32
    %c0_i32_13 = arith.constant 0 : i32
    %c16_i32_14 = arith.constant 16 : i32
    %4 = arith.addi %c0_i32_13, %c16_i32_14 : i32
    %c1_i32_15 = arith.constant 1 : i32
    scf.for %arg14 = %c0_i32_13 to %4 step %c1_i32_15  : i32 {
      %c1_i32_42 = arith.constant 1 : i32
      %35 = arith.muli %arg14, %c1_i32_42 : i32
      %c0_i32_43 = arith.constant 0 : i32
      %36 = arith.addi %c0_i32_43, %35 : i32
      %c0_i32_44 = arith.constant 0 : i32
      %c0_i32_45 = arith.constant 0 : i32
      %37 = tpu.memref_slice %arg4[%c0_i32_44, %c0_i32_45] : memref<64x32xf32, #tpu.memory_space<any>> -> memref<1x32xf32, #tpu.memory_space<any>>
      %c0_i32_46 = arith.constant 0 : i32
      %38 = tpu.memref_slice %arg10[%36, %c0_i32_46] : memref<16x32xf32, #tpu.memory_space<vmem>> -> memref<1x32xf32, #tpu.memory_space<vmem>>
      %39 = tpu.memref_slice %arg13[%c0_i32_12] : memref<3x!tpu.dma_semaphore, #tpu.memory_space<semaphore_mem>> -> memref<1x!tpu.dma_semaphore, #tpu.memory_space<semaphore_mem>>
      %40 = tpu.memref_squeeze %39 : memref<1x!tpu.dma_semaphore, #tpu.memory_space<semaphore_mem>> -> memref<!tpu.dma_semaphore, #tpu.memory_space<semaphore_mem>>
      tpu.wait_dma2 semaphore(%40 : memref<!tpu.dma_semaphore, #tpu.memory_space<semaphore_mem>>) src(%37 : memref<1x32xf32, #tpu.memory_space<any>>) dst(%38 : memref<1x32xf32, #tpu.memory_space<vmem>>)
    }
    %c16_i32_16 = arith.constant 16 : i32
    %c1_i32_17 = arith.constant 1 : i32
    %c0_i32_18 = arith.constant 0 : i32
    %c16_i32_19 = arith.constant 16 : i32
    %5 = arith.addi %c0_i32_18, %c16_i32_19 : i32
    %c1_i32_20 = arith.constant 1 : i32
    scf.for %arg14 = %c0_i32_18 to %5 step %c1_i32_20  : i32 {
      %c1_i32_42 = arith.constant 1 : i32
      %35 = arith.muli %arg14, %c1_i32_42 : i32
      %c0_i32_43 = arith.constant 0 : i32
      %36 = arith.addi %c0_i32_43, %35 : i32
      %c0_i32_44 = arith.constant 0 : i32
      %c0_i32_45 = arith.constant 0 : i32
      %37 = tpu.memref_slice %arg5[%c0_i32_44, %c0_i32_45] : memref<16x32xf32, #tpu.memory_space<any>> -> memref<1x32xf32, #tpu.memory_space<any>>
      %c0_i32_46 = arith.constant 0 : i32
      %38 = tpu.memref_slice %arg11[%36, %c0_i32_46] : memref<16x32xf32, #tpu.memory_space<vmem>> -> memref<1x32xf32, #tpu.memory_space<vmem>>
      %39 = tpu.memref_slice %arg13[%c1_i32_17] : memref<3x!tpu.dma_semaphore, #tpu.memory_space<semaphore_mem>> -> memref<1x!tpu.dma_semaphore, #tpu.memory_space<semaphore_mem>>
      %40 = tpu.memref_squeeze %39 : memref<1x!tpu.dma_semaphore, #tpu.memory_space<semaphore_mem>> -> memref<!tpu.dma_semaphore, #tpu.memory_space<semaphore_mem>>
      tpu.wait_dma2 semaphore(%40 : memref<!tpu.dma_semaphore, #tpu.memory_space<semaphore_mem>>) src(%37 : memref<1x32xf32, #tpu.memory_space<any>>) dst(%38 : memref<1x32xf32, #tpu.memory_space<vmem>>)
    }
    %c16_i32_21 = arith.constant 16 : i32
    %c2_i32_22 = arith.constant 2 : i32
    %c0_i32_23 = arith.constant 0 : i32
    %c16_i32_24 = arith.constant 16 : i32
    %6 = arith.addi %c0_i32_23, %c16_i32_24 : i32
    %c1_i32_25 = arith.constant 1 : i32
    scf.for %arg14 = %c0_i32_23 to %6 step %c1_i32_25  : i32 {
      %c1_i32_42 = arith.constant 1 : i32
      %35 = arith.muli %arg14, %c1_i32_42 : i32
      %c0_i32_43 = arith.constant 0 : i32
      %36 = arith.addi %c0_i32_43, %35 : i32
      %c0_i32_44 = arith.constant 0 : i32
      %c0_i32_45 = arith.constant 0 : i32
      %37 = tpu.memref_slice %arg6[%c0_i32_44, %c0_i32_45] : memref<2x32xf32, #tpu.memory_space<any>> -> memref<1x32xf32, #tpu.memory_space<any>>
      %c0_i32_46 = arith.constant 0 : i32
      %38 = tpu.memref_slice %arg12[%36, %c0_i32_46] : memref<16x32xf32, #tpu.memory_space<vmem>> -> memref<1x32xf32, #tpu.memory_space<vmem>>
      %39 = tpu.memref_slice %arg13[%c2_i32_22] : memref<3x!tpu.dma_semaphore, #tpu.memory_space<semaphore_mem>> -> memref<1x!tpu.dma_semaphore, #tpu.memory_space<semaphore_mem>>
      %40 = tpu.memref_squeeze %39 : memref<1x!tpu.dma_semaphore, #tpu.memory_space<semaphore_mem>> -> memref<!tpu.dma_semaphore, #tpu.memory_space<semaphore_mem>>
      tpu.wait_dma2 semaphore(%40 : memref<!tpu.dma_semaphore, #tpu.memory_space<semaphore_mem>>) src(%37 : memref<1x32xf32, #tpu.memory_space<any>>) dst(%38 : memref<1x32xf32, #tpu.memory_space<vmem>>)
    }
    %c16_i32_26 = arith.constant 16 : i32
    %c0 = arith.constant 0 : index
    %c0_27 = arith.constant 0 : index
    %7 = vector.load %arg10[%c0, %c0_27] : memref<16x32xf32, #tpu.memory_space<vmem>>, vector<16x32xf32>
    %c0_28 = arith.constant 0 : index
    %c0_29 = arith.constant 0 : index
    %8 = vector.load %arg11[%c0_28, %c0_29] : memref<16x32xf32, #tpu.memory_space<vmem>>, vector<16x32xf32>
    %9 = arith.addf %7, %8 : vector<16x32xf32>
    %c0_30 = arith.constant 0 : index
    %c0_31 = arith.constant 0 : index
    %10 = vector.load %arg12[%c0_30, %c0_31] : memref<16x32xf32, #tpu.memory_space<vmem>>, vector<16x32xf32>
    %11 = arith.addf %9, %10 : vector<16x32xf32>
    %cst = arith.constant dense<0.000000e+00> : vector<16xf32>
    %12 = vector.multi_reduction <add>, %11, %cst [1] : vector<16x32xf32> to vector<16xf32>
    %13 = vector.shape_cast %12 : vector<16xf32> to vector<16x1xf32>
    %cst_32 = arith.constant 3.200000e+01 : f32
    %14 = vector.broadcast %cst_32 : f32 to vector<16x1xf32>
    %15 = arith.divf %13, %14 : vector<16x1xf32>
    %16 = vector.broadcast %15 : vector<16x1xf32> to vector<16x32xf32>
    %17 = arith.subf %11, %16 : vector<16x32xf32>
    %18 = arith.mulf %17, %17 : vector<16x32xf32>
    %cst_33 = arith.constant dense<0.000000e+00> : vector<16xf32>
    %19 = vector.multi_reduction <add>, %18, %cst_33 [1] : vector<16x32xf32> to vector<16xf32>
    %20 = vector.shape_cast %19 : vector<16xf32> to vector<16x1xf32>
    %cst_34 = arith.constant 3.200000e+01 : f32
    %21 = vector.broadcast %cst_34 : f32 to vector<16x1xf32>
    %22 = arith.divf %20, %21 : vector<16x1xf32>
    %cst_35 = arith.constant 9.99999996E-13 : f32
    %23 = vector.broadcast %cst_35 : f32 to vector<16x1xf32>
    %24 = arith.addf %22, %23 : vector<16x1xf32>
    %25 = math.rsqrt %24 : vector<16x1xf32>
    %26 = vector.broadcast %25 : vector<16x1xf32> to vector<16x32xf32>
    %27 = arith.mulf %17, %26 : vector<16x32xf32>
    %c0_36 = arith.constant 0 : index
    %c0_37 = arith.constant 0 : index
    %28 = vector.load %arg7[%c0_36, %c0_37] : memref<1x32xf32, #tpu.memory_space<vmem>>, vector<1x32xf32>
    %29 = vector.broadcast %28 : vector<1x32xf32> to vector<16x32xf32>
    %30 = arith.mulf %27, %29 : vector<16x32xf32>
    %c0_38 = arith.constant 0 : index
    %c0_39 = arith.constant 0 : index
    %31 = vector.load %arg8[%c0_38, %c0_39] : memref<1x32xf32, #tpu.memory_space<vmem>>, vector<1x32xf32>
    %32 = vector.broadcast %31 : vector<1x32xf32> to vector<16x32xf32>
    %33 = arith.addf %30, %32 : vector<16x32xf32>
    %c0_40 = arith.constant 0 : index
    %c0_41 = arith.constant 0 : index
    %34 = vector.load %arg9[%c0_40, %c0_41] : memref<16x32xf32, #tpu.memory_space<vmem>>, vector<16x32xf32>
    tpu.vector_store %arg9[%c0_40, %c0_41], %33 {strides = array<i32>} : memref<16x32xf32, #tpu.memory_space<vmem>>, vector<16x32xf32>,
    return
  }
  func.func @transform_3(%arg0: i32, %arg1: memref<16xi32, #tpu.memory_space<smem>>, %arg2: memref<16xi32, #tpu.memory_space<smem>>, %arg3: memref<16xi32, #tpu.memory_space<smem>>) -> (i32, i32) {
    %c0_i32 = arith.constant 0 : i32
    %c0_i32_0 = arith.constant 0 : i32
    %c0_i32_1 = arith.constant 0 : i32
    return %c0_i32, %c0_i32_0 : i32, i32
  }
  func.func @transform_4(%arg0: i32, %arg1: memref<16xi32, #tpu.memory_space<smem>>, %arg2: memref<16xi32, #tpu.memory_space<smem>>, %arg3: memref<16xi32, #tpu.memory_space<smem>>) -> (i32, i32) {
    %c0_i32 = arith.constant 0 : i32
    %c0_i32_0 = arith.constant 0 : i32
    %c0_i32_1 = arith.constant 0 : i32
    return %c0_i32, %c0_i32_0 : i32, i32
  }
  func.func @transform_5(%arg0: i32, %arg1: memref<16xi32, #tpu.memory_space<smem>>, %arg2: memref<16xi32, #tpu.memory_space<smem>>, %arg3: memref<16xi32, #tpu.memory_space<smem>>) -> (i32, i32) {
    %c0_i32 = arith.constant 0 : i32
    %c0_i32_0 = arith.constant 0 : i32
    return %arg0, %c0_i32 : i32, i32
  }
}

</mosaic_0001>

<llo_original>
// kernel: tpu_custom_call.1
$region0: #{tpu_custom_call.1}
  #allocation0 [shape = 'u32[]', space=smem, size = 0x4, offset = 0x4, fixed_abs, tag = 'smem constant byte address 0x4 - core index']
  #allocation1 [shape = 'u32[144,128]{1,0:T(1,128)}', space=vmem, size = 0x12000, scoped, tag = 'internal scratch']
  #allocation2 [shape = 'f32[16,32]{1,0:T(8,128)}', space=vmem, size = 0x2000, scoped, tag = 'scratch operand']
  #allocation3 [shape = 'f32[16,32]{1,0:T(8,128)}', space=vmem, size = 0x2000, scoped, tag = 'scratch operand']
  #allocation4 [shape = 'f32[16,32]{1,0:T(8,128)}', space=vmem, size = 0x2000, scoped, tag = 'scratch operand']
  #allocation5 [shape = 's32[3]{0}', space=sflag, size = 0xc, scoped, tag = 'scratch operand']
  #allocation6 [shape = 's32[1]{0}', space=sflag, size = 0x4, scoped, tag = 'scoped memory for tpu_custom_call.1']
  #allocation7 [shape = 'u8[512]{0}', space=smem, size = 0x200, scoped, tag = 'prefetched SMEM operand 0']
  #allocation8 [shape = 'u8[512]{0}', space=smem, size = 0x200, scoped, tag = 'prefetched SMEM operand 1']
  #allocation9 [shape = 'u8[512]{0}', space=smem, size = 0x200, scoped, tag = 'prefetched SMEM operand 2']
  #allocation12 [shape = 's32[]', space=sflag, size = 0x4, offset = 0, fixed_abs, tag = 'sflag constant byte address 0x0 - dummy sync flag']
  #allocation13 [shape = 's32[]', space=sflag, size = 0x4, offset = 0, fixed_abs, tag = 'sflag constant byte address 0x0 - dummy sync flag']
  #allocation14 [shape = 's32[]', space=sflag, size = 0x4, offset = 0, fixed_abs, tag = 'sflag constant byte address 0x0 - dummy sync flag']
  %s0 = inlined_call_operand.vmem [shape: s32[16], index: 0, kind: input, shape index: {}]
  %s1 = inlined_call_operand.vmem [shape: s32[16], index: 1, kind: input, shape index: {}]
  %s2 = inlined_call_operand.vmem [shape: s32[16], index: 2, kind: input, shape index: {}]
  %s3 = inlined_call_operand.vmem [shape: f32[64,32], index: 3, kind: input, shape index: {}]
  %s4 = inlined_call_operand.vmem [shape: f32[16,32], index: 4, kind: input, shape index: {}]
  %s5 = inlined_call_operand.vmem [shape: f32[2,32], index: 5, kind: input, shape index: {}]
  %s6 = inlined_call_operand.vmem [shape: f32[1,32], index: 6, kind: input, shape index: {}]
  %s7 = inlined_call_operand.vmem [shape: f32[1,32], index: 7, kind: input, shape index: {}]
  %s8 = inlined_call_operand.hbm [shape: f32[16,32], index: 8, kind: output, shape index: {}]
  %s9 = sld [smem:[#allocation0]]
  $region150: #{tpu_custom_call.1} parent=0
    _
  %s11 = ssub.s32 1, %s9
  %s12 = scalar_select 0, %s11, %s9
  %s13 = sshll.u32 %s0, 4
  %s14 = int_to_ptr.vmem [resolvable:$true] %s13
  %16 = dma.vmem_to_smem %s14, 16, [#allocation7], [#allocation6]
  %s17 = sshll.u32 %s1, 4
  %s18 = int_to_ptr.vmem [resolvable:$true] %s17
  %20 = dma.vmem_to_smem %s18, 16, [#allocation8], [#allocation6]
  %s21 = sshll.u32 %s2, 4
  %s22 = int_to_ptr.vmem [resolvable:$true] %s21
  %24 = dma.vmem_to_smem %s22, 16, [#allocation9], [#allocation6]
  %25 = dma.done [#allocation6], 48
  %26 = sfence
  $region1: #{tpu_custom_call.1} parent=0
    #allocation10 [shape = 'u8[8192]{0}', space=vmem, size = 0x2000, scoped, tag = 'output window, operand 0, single buffered']
    #allocation11 [shape = 's32[1]{0}', space=sflag, size = 0x4, scoped, tag = 'scoped memory for tpu_custom_call.1']
    %27 = vsyncpa [#allocation11], 0
    // Predicated region
    $region2: #{tpu_custom_call.1} parent=1 // pred_check
      _
    $region3: #{tpu_custom_call.1} parent=1 // pred_check_branch
      %29 = sbr.rel (0) target = $region5
    $region4: #{tpu_custom_call.1} parent=1 // pred_region
      _
    $region5: #{tpu_custom_call.1} parent=1 // pred_fallthru
      _
    // Predicated region
    $region6: #{tpu_custom_call.1} parent=1 // pred_check
      _
    $region7: #{tpu_custom_call.1} parent=1 // pred_check_branch
      %31 = sbr.rel (0) target = $region9
    $region8: #{tpu_custom_call.1} parent=1 // pred_region
      _
    $region9: #{tpu_custom_call.1} parent=1 // pred_fallthru
      _
    %s32 = smul.u32 0, 16
    loop: start=0, step=1, limit=16
    $region10: #{tpu_custom_call.1} parent=1 // loop_pre_header
      _
    $region11: #{tpu_custom_call.1} parent=1 // loop_header
      %s34 = sphi 0, %s38
      %p35 = scmp.ge.s32.totalorder %s34, 16
    $region12: #{tpu_custom_call.1} parent=1 // loop_header_branch
      %37 = sbr.rel (%p35) target = $region16
    $region13: #{tpu_custom_call.1} parent=1 // loop_body
      %s39 = sadd.s32 %s32, %s34
      %s40 = sld [smem:[#allocation7 + %s39]]
      %s41 = scalar_lea.vmem %s3, %s40
      %s42 = scalar_lea.vmem [#allocation2], %s34
      %p44 = scmp.lt.u32.totalorder 1, 8
      %p45 = pneg %p44
      // Predicated region
      $region17: #{tpu_custom_call.1} parent=13 // pred_check
        _
      $region18: #{tpu_custom_call.1} parent=13 // pred_check_branch
        %47 = sbr.rel (%p44) target = $region20
      $region19: #{tpu_custom_call.1} parent=13 // pred_region
        %s62 = sand.u32 1, 7
        %p63 = scmp.eq.s32.totalorder %s62, 0
        %p64 = pneg %p63
        // Predicated region
        $region32: #{tpu_custom_call.1} parent=19 // pred_check
          _
        $region33: #{tpu_custom_call.1} parent=19 // pred_check_branch
          %66 = sbr.rel (%p63) target = $region35
        $region34: #{tpu_custom_call.1} parent=19 // pred_region
          %s67 = sand.u32 1, 7
          %s68 = ssub.s32 1, %s67
          %s69 = scalar_lea.vmem %s41, %s68
          %s70 = ssub.s32 1, %s67
          %s71 = scalar_lea.vmem %s42, %s70 [#allocation2]
          %s72 = sshllo.u32 0, %s67
          loop: start=0, step=1, limit=1
          $region36: #{tpu_custom_call.1} parent=34 // loop_pre_header
            _
          $region37: #{tpu_custom_call.1} parent=34 // loop_header
            %s74 = sphi 0, %s78
            %p75 = scmp.ge.s32.totalorder %s74, 1
            %s79 = sphi %s69, %s69
            %s80 = sphi %s71, %s71
          $region38: #{tpu_custom_call.1} parent=34 // loop_header_branch
            %77 = sbr.rel (%p75) target = $region42
          $region39: #{tpu_custom_call.1} parent=34 // loop_body
            %v81 = vld [vmem:[%s79] sm:%s72]
            %82 = vst [vmem:[%s80] sm:%s72] %v81
          $region40: #{tpu_custom_call.1} parent=34 // loop_footer
            %s78 = sadd.s32 1, %s74
          $region41: #{tpu_custom_call.1} parent=34 // loop_footer_branch
            %73 = sbr.rel target = $region37
          $region42: #{tpu_custom_call.1} parent=34 // loop_exit
            _
        $region35: #{tpu_custom_call.1} parent=19 // pred_fallthru
          _
      $region20: #{tpu_custom_call.1} parent=13 // pred_fallthru
        _
      // Predicated region
      $region21: #{tpu_custom_call.1} parent=13 // pred_check
        %p48 = pneg %p44
      $region22: #{tpu_custom_call.1} parent=13 // pred_check_branch
        %50 = sbr.rel (%p48) target = $region24
      $region23: #{tpu_custom_call.1} parent=13 // pred_region
        %s51 = sshllo.u32 0, 1
        loop: start=0, step=1, limit=1
        $region25: #{tpu_custom_call.1} parent=23 // loop_pre_header
          _
        $region26: #{tpu_custom_call.1} parent=23 // loop_header
          %s53 = sphi 0, %s57
          %p54 = scmp.ge.s32.totalorder %s53, 1
          %s58 = sphi %s41, %s41
          %s59 = sphi %s42, %s42
        $region27: #{tpu_custom_call.1} parent=23 // loop_header_branch
          %56 = sbr.rel (%p54) target = $region31
        $region28: #{tpu_custom_call.1} parent=23 // loop_body
          %v60 = vld [vmem:[%s58] sm:%s51]
          %61 = vst [vmem:[%s59] sm:%s51] %v60
        $region29: #{tpu_custom_call.1} parent=23 // loop_footer
          %s57 = sadd.s32 1, %s53
        $region30: #{tpu_custom_call.1} parent=23 // loop_footer_branch
          %52 = sbr.rel target = $region26
        $region31: #{tpu_custom_call.1} parent=23 // loop_exit
          _
      $region24: #{tpu_custom_call.1} parent=13 // pred_fallthru
        _
      // Predicated region
      $region43: #{tpu_custom_call.1} parent=13 // pred_check
        _
      $region44: #{tpu_custom_call.1} parent=13 // pred_check_branch
        %85 = sbr.rel (0) target = $region46
      $region45: #{tpu_custom_call.1} parent=13 // pred_region
        %86 = vsyncadd [#allocation5], 16
      $region46: #{tpu_custom_call.1} parent=13 // pred_fallthru
        _
    $region14: #{tpu_custom_call.1} parent=1 // loop_footer
      %s38 = sadd.s32 1, %s34
    $region15: #{tpu_custom_call.1} parent=1 // loop_footer_branch
      %33 = sbr.rel target = $region11
    $region16: #{tpu_custom_call.1} parent=1 // loop_exit
      _
    loop: start=0, step=1, limit=16
    $region47: #{tpu_custom_call.1} parent=1 // loop_pre_header
      _
    $region48: #{tpu_custom_call.1} parent=1 // loop_header
      %s88 = sphi 0, %s92
      %p89 = scmp.ge.s32.totalorder %s88, 16
    $region49: #{tpu_custom_call.1} parent=1 // loop_header_branch
      %91 = sbr.rel (%p89) target = $region53
    $region50: #{tpu_custom_call.1} parent=1 // loop_body
      %s93 = sadd.s32 %s32, %s88
      %s94 = sld [smem:[#allocation8 + %s93]]
      %s95 = scalar_lea.vmem %s4, %s94
      %s96 = scalar_lea.vmem [#allocation3], %s88
      %s97 = scalar_lea.sflag [#allocation5], 1
      %p99 = scmp.lt.u32.totalorder 1, 8
      %p100 = pneg %p99
      // Predicated region
      $region54: #{tpu_custom_call.1} parent=50 // pred_check
        _
      $region55: #{tpu_custom_call.1} parent=50 // pred_check_branch
        %102 = sbr.rel (%p99) target = $region57
      $region56: #{tpu_custom_call.1} parent=50 // pred_region
        %s117 = sand.u32 1, 7
        %p118 = scmp.eq.s32.totalorder %s117, 0
        %p119 = pneg %p118
        // Predicated region
        $region69: #{tpu_custom_call.1} parent=56 // pred_check
          _
        $region70: #{tpu_custom_call.1} parent=56 // pred_check_branch
          %121 = sbr.rel (%p118) target = $region72
        $region71: #{tpu_custom_call.1} parent=56 // pred_region
          %s122 = sand.u32 1, 7
          %s123 = ssub.s32 1, %s122
          %s124 = scalar_lea.vmem %s95, %s123
          %s125 = ssub.s32 1, %s122
          %s126 = scalar_lea.vmem %s96, %s125 [#allocation3]
          %s127 = sshllo.u32 0, %s122
          loop: start=0, step=1, limit=1
          $region73: #{tpu_custom_call.1} parent=71 // loop_pre_header
            _
          $region74: #{tpu_custom_call.1} parent=71 // loop_header
            %s129 = sphi 0, %s133
            %p130 = scmp.ge.s32.totalorder %s129, 1
            %s134 = sphi %s124, %s124
            %s135 = sphi %s126, %s126
          $region75: #{tpu_custom_call.1} parent=71 // loop_header_branch
            %132 = sbr.rel (%p130) target = $region79
          $region76: #{tpu_custom_call.1} parent=71 // loop_body
            %v136 = vld [vmem:[%s134] sm:%s127]
            %137 = vst [vmem:[%s135] sm:%s127] %v136
          $region77: #{tpu_custom_call.1} parent=71 // loop_footer
            %s133 = sadd.s32 1, %s129
          $region78: #{tpu_custom_call.1} parent=71 // loop_footer_branch
            %128 = sbr.rel target = $region74
          $region79: #{tpu_custom_call.1} parent=71 // loop_exit
            _
        $region72: #{tpu_custom_call.1} parent=56 // pred_fallthru
          _
      $region57: #{tpu_custom_call.1} parent=50 // pred_fallthru
        _
      // Predicated region
      $region58: #{tpu_custom_call.1} parent=50 // pred_check
        %p103 = pneg %p99
      $region59: #{tpu_custom_call.1} parent=50 // pred_check_branch
        %105 = sbr.rel (%p103) target = $region61
      $region60: #{tpu_custom_call.1} parent=50 // pred_region
        %s106 = sshllo.u32 0, 1
        loop: start=0, step=1, limit=1
        $region62: #{tpu_custom_call.1} parent=60 // loop_pre_header
          _
        $region63: #{tpu_custom_call.1} parent=60 // loop_header
          %s108 = sphi 0, %s112
          %p109 = scmp.ge.s32.totalorder %s108, 1
          %s113 = sphi %s95, %s95
          %s114 = sphi %s96, %s96
        $region64: #{tpu_custom_call.1} parent=60 // loop_header_branch
          %111 = sbr.rel (%p109) target = $region68
        $region65: #{tpu_custom_call.1} parent=60 // loop_body
          %v115 = vld [vmem:[%s113] sm:%s106]
          %116 = vst [vmem:[%s114] sm:%s106] %v115
        $region66: #{tpu_custom_call.1} parent=60 // loop_footer
          %s112 = sadd.s32 1, %s108
        $region67: #{tpu_custom_call.1} parent=60 // loop_footer_branch
          %107 = sbr.rel target = $region63
        $region68: #{tpu_custom_call.1} parent=60 // loop_exit
          _
      $region61: #{tpu_custom_call.1} parent=50 // pred_fallthru
        _
      // Predicated region
      $region80: #{tpu_custom_call.1} parent=50 // pred_check
        _
      $region81: #{tpu_custom_call.1} parent=50 // pred_check_branch
        %140 = sbr.rel (0) target = $region83
      $region82: #{tpu_custom_call.1} parent=50 // pred_region
        %141 = vsyncadd %s97, 16
      $region83: #{tpu_custom_call.1} parent=50 // pred_fallthru
        _
    $region51: #{tpu_custom_call.1} parent=1 // loop_footer
      %s92 = sadd.s32 1, %s88
    $region52: #{tpu_custom_call.1} parent=1 // loop_footer_branch
      %87 = sbr.rel target = $region48
    $region53: #{tpu_custom_call.1} parent=1 // loop_exit
      _
    loop: start=0, step=1, limit=16
    $region84: #{tpu_custom_call.1} parent=1 // loop_pre_header
      _
    $region85: #{tpu_custom_call.1} parent=1 // loop_header
      %s143 = sphi 0, %s147
      %p144 = scmp.ge.s32.totalorder %s143, 16
    $region86: #{tpu_custom_call.1} parent=1 // loop_header_branch
      %146 = sbr.rel (%p144) target = $region90
    $region87: #{tpu_custom_call.1} parent=1 // loop_body
      %s148 = sadd.s32 %s32, %s143
      %s149 = sld [smem:[#allocation9 + %s148]]
      %s150 = scalar_lea.vmem %s5, %s149
      %s151 = scalar_lea.vmem [#allocation4], %s143
      %s152 = scalar_lea.sflag [#allocation5], 2
      %p154 = scmp.lt.u32.totalorder 1, 8
      %p155 = pneg %p154
      // Predicated region
      $region91: #{tpu_custom_call.1} parent=87 // pred_check
        _
      $region92: #{tpu_custom_call.1} parent=87 // pred_check_branch
        %157 = sbr.rel (%p154) target = $region94
      $region93: #{tpu_custom_call.1} parent=87 // pred_region
        %s172 = sand.u32 1, 7
        %p173 = scmp.eq.s32.totalorder %s172, 0
        %p174 = pneg %p173
        // Predicated region
        $region106: #{tpu_custom_call.1} parent=93 // pred_check
          _
        $region107: #{tpu_custom_call.1} parent=93 // pred_check_branch
          %176 = sbr.rel (%p173) target = $region109
        $region108: #{tpu_custom_call.1} parent=93 // pred_region
          %s177 = sand.u32 1, 7
          %s178 = ssub.s32 1, %s177
          %s179 = scalar_lea.vmem %s150, %s178
          %s180 = ssub.s32 1, %s177
          %s181 = scalar_lea.vmem %s151, %s180 [#allocation4]
          %s182 = sshllo.u32 0, %s177
          loop: start=0, step=1, limit=1
          $region110: #{tpu_custom_call.1} parent=108 // loop_pre_header
            _
          $region111: #{tpu_custom_call.1} parent=108 // loop_header
            %s184 = sphi 0, %s188
            %p185 = scmp.ge.s32.totalorder %s184, 1
            %s189 = sphi %s179, %s179
            %s190 = sphi %s181, %s181
          $region112: #{tpu_custom_call.1} parent=108 // loop_header_branch
            %187 = sbr.rel (%p185) target = $region116
          $region113: #{tpu_custom_call.1} parent=108 // loop_body
            %v191 = vld [vmem:[%s189] sm:%s182]
            %192 = vst [vmem:[%s190] sm:%s182] %v191
          $region114: #{tpu_custom_call.1} parent=108 // loop_footer
            %s188 = sadd.s32 1, %s184
          $region115: #{tpu_custom_call.1} parent=108 // loop_footer_branch
            %183 = sbr.rel target = $region111
          $region116: #{tpu_custom_call.1} parent=108 // loop_exit
            _
        $region109: #{tpu_custom_call.1} parent=93 // pred_fallthru
          _
      $region94: #{tpu_custom_call.1} parent=87 // pred_fallthru
        _
      // Predicated region
      $region95: #{tpu_custom_call.1} parent=87 // pred_check
        %p158 = pneg %p154
      $region96: #{tpu_custom_call.1} parent=87 // pred_check_branch
        %160 = sbr.rel (%p158) target = $region98
      $region97: #{tpu_custom_call.1} parent=87 // pred_region
        %s161 = sshllo.u32 0, 1
        loop: start=0, step=1, limit=1
        $region99: #{tpu_custom_call.1} parent=97 // loop_pre_header
          _
        $region100: #{tpu_custom_call.1} parent=97 // loop_header
          %s163 = sphi 0, %s167
          %p164 = scmp.ge.s32.totalorder %s163, 1
          %s168 = sphi %s150, %s150
          %s169 = sphi %s151, %s151
        $region101: #{tpu_custom_call.1} parent=97 // loop_header_branch
          %166 = sbr.rel (%p164) target = $region105
        $region102: #{tpu_custom_call.1} parent=97 // loop_body
          %v170 = vld [vmem:[%s168] sm:%s161]
          %171 = vst [vmem:[%s169] sm:%s161] %v170
        $region103: #{tpu_custom_call.1} parent=97 // loop_footer
          %s167 = sadd.s32 1, %s163
        $region104: #{tpu_custom_call.1} parent=97 // loop_footer_branch
          %162 = sbr.rel target = $region100
        $region105: #{tpu_custom_call.1} parent=97 // loop_exit
          _
      $region98: #{tpu_custom_call.1} parent=87 // pred_fallthru
        _
      // Predicated region
      $region117: #{tpu_custom_call.1} parent=87 // pred_check
        _
      $region118: #{tpu_custom_call.1} parent=87 // pred_check_branch
        %195 = sbr.rel (0) target = $region120
      $region119: #{tpu_custom_call.1} parent=87 // pred_region
        %196 = vsyncadd %s152, 16
      $region120: #{tpu_custom_call.1} parent=87 // pred_fallthru
        _
    $region88: #{tpu_custom_call.1} parent=1 // loop_footer
      %s147 = sadd.s32 1, %s143
    $region89: #{tpu_custom_call.1} parent=1 // loop_footer_branch
      %142 = sbr.rel target = $region85
    $region90: #{tpu_custom_call.1} parent=1 // loop_exit
      _
    loop: start=0, step=1, limit=16
    $region121: #{tpu_custom_call.1} parent=1 // loop_pre_header
      _
    $region122: #{tpu_custom_call.1} parent=1 // loop_header
      %s198 = sphi 0, %s202
      %p199 = scmp.ge.s32.totalorder %s198, 16
    $region123: #{tpu_custom_call.1} parent=1 // loop_header_branch
      %201 = sbr.rel (%p199) target = $region127
    $region124: #{tpu_custom_call.1} parent=1 // loop_body
      %s203 = smul.u32 1, 1
      %s204 = sshll.u32 %s203, 4
      %205 = dma.done [#allocation5], %s204
    $region125: #{tpu_custom_call.1} parent=1 // loop_footer
      %s202 = sadd.s32 1, %s198
    $region126: #{tpu_custom_call.1} parent=1 // loop_footer_branch
      %197 = sbr.rel target = $region122
    $region127: #{tpu_custom_call.1} parent=1 // loop_exit
      _
    loop: start=0, step=1, limit=16
    $region128: #{tpu_custom_call.1} parent=1 // loop_pre_header
      _
    $region129: #{tpu_custom_call.1} parent=1 // loop_header
      %s207 = sphi 0, %s211
      %p208 = scmp.ge.s32.totalorder %s207, 16
    $region130: #{tpu_custom_call.1} parent=1 // loop_header_branch
      %210 = sbr.rel (%p208) target = $region134
    $region131: #{tpu_custom_call.1} parent=1 // loop_body
      %s212 = scalar_lea.sflag [#allocation5], 1
      %s213 = smul.u32 1, 1
      %s214 = sshll.u32 %s213, 4
      %215 = dma.done %s212, %s214
    $region132: #{tpu_custom_call.1} parent=1 // loop_footer
      %s211 = sadd.s32 1, %s207
    $region133: #{tpu_custom_call.1} parent=1 // loop_footer_branch
      %206 = sbr.rel target = $region129
    $region134: #{tpu_custom_call.1} parent=1 // loop_exit
      _
    loop: start=0, step=1, limit=16
    $region135: #{tpu_custom_call.1} parent=1 // loop_pre_header
      _
    $region136: #{tpu_custom_call.1} parent=1 // loop_header
      %s217 = sphi 0, %s221
      %p218 = scmp.ge.s32.totalorder %s217, 16
    $region137: #{tpu_custom_call.1} parent=1 // loop_header_branch
      %220 = sbr.rel (%p218) target = $region141
    $region138: #{tpu_custom_call.1} parent=1 // loop_body
      %s222 = scalar_lea.sflag [#allocation5], 2
      %s223 = smul.u32 1, 1
      %s224 = sshll.u32 %s223, 4
      %225 = dma.done %s222, %s224
    $region139: #{tpu_custom_call.1} parent=1 // loop_footer
      %s221 = sadd.s32 1, %s217
    $region140: #{tpu_custom_call.1} parent=1 // loop_footer_branch
      %216 = sbr.rel target = $region136
    $region141: #{tpu_custom_call.1} parent=1 // loop_exit
      _
    %v226 = vld [vmem:[#allocation2] sm:$0xff]
    %v227 = vld [vmem:[#allocation2 + $0x8] sm:$0xff]
    %v228 = vld [vmem:[#allocation3] sm:$0xff]
    %v229 = vld [vmem:[#allocation3 + $0x8] sm:$0xff]
    %v230 = vadd.f32 %v226, %v228
    %v231 = vadd.f32 %v227, %v229
    %v232 = vld [vmem:[#allocation4] sm:$0xff]
    %v233 = vld [vmem:[#allocation4 + $0x8] sm:$0xff]
    %v234 = vadd.f32 %v230, %v232
    %v235 = vadd.f32 %v231, %v233
    %vm236 = vcmask 261120
    %v237 = vsel %vm236, %v234, 0.0
    %238 = vadd.xlane.f32.xlu0 %v237
    %v239 = vpop.xlane.xlu0 %238
    %v240 = vsel %vm236, %v235, 0.0
    %241 = vadd.xlane.f32.xlu0 %v240
    %v242 = vpop.xlane.xlu0 %241
    %v243 = vrcp.pop 32.0
    %v244 = vmul.f32 %v239, %v243
    %v245 = vmul.f32 %v242, %v243
    %v246 = vsub.f32 %v234, %v244
    %v247 = vsub.f32 %v235, %v245
    %v248 = vmul.f32 %v246, %v246
    %v249 = vmul.f32 %v247, %v247
    %v250 = vsel %vm236, %v248, 0.0
    %251 = vadd.xlane.f32.xlu0 %v250
    %v252 = vpop.xlane.xlu0 %251
    %v253 = vsel %vm236, %v249, 0.0
    %254 = vadd.xlane.f32.xlu0 %v253
    %v255 = vpop.xlane.xlu0 %254
    %v256 = vmul.f32 %v252, %v243
    %v257 = vmul.f32 %v255, %v243
    %v258 = vadd.f32 %v256, 1e-12
    %v259 = vadd.f32 %v257, 1e-12
    %v260 = vrsqrt.pop %v258
    %v261 = vrsqrt.pop %v259
    %v262 = vmul.f32 %v246, %v260
    %v263 = vmul.f32 %v247, %v261
    %v264 = vld [vmem:[%s6] sm:$0x1]
    %v266 = vlaneseq
    %v267 = vshrl.u32 %v266, 7
    %v268 = vsub.s32 0, %v267
    %v269 = vrot.slane %v264, %v268
    %v271 = vmul.f32 %v262, %v269
    %v272 = vmul.f32 %v263, %v269
    %v273 = vld [vmem:[%s7] sm:$0x1]
    %v275 = vlaneseq
    %v276 = vshrl.u32 %v275, 7
    %v277 = vsub.s32 0, %v276
    %v278 = vrot.slane %v273, %v277
    %v280 = vadd.f32 %v271, %v278
    %v281 = vadd.f32 %v272, %v278
    %282 = vst.msk [vmem:[#allocation10] sm:$0xff] %vm236, %v280
    %283 = vst.msk [vmem:[#allocation10 + $0x8] sm:$0xff] %vm236, %v281
    // Predicated region
    $region142: #{tpu_custom_call.1} parent=1 // pred_check
      _
    $region143: #{tpu_custom_call.1} parent=1 // pred_check_branch
      %285 = sbr.rel (0) target = $region145
    $region144: #{tpu_custom_call.1} parent=1 // pred_region
      %s287 = ssub.s32 256, 256
      %288 = vsyncadd [#allocation11], %s287
      %s289 = sshll.u32 [#allocation10], 4
      %s290 = int_to_ptr.vmem [resolvable:$true] %s289
      %295 = dma.vmem_to_hbm [thread:$0]  %s290, 256, %s8, [#allocation11], 128, 128, 8
    $region145: #{tpu_custom_call.1} parent=1 // pred_fallthru
      _
    // Predicated region
    $region146: #{tpu_custom_call.1} parent=1 // pred_check
      _
    $region147: #{tpu_custom_call.1} parent=1 // pred_check_branch
      %297 = sbr.rel (0) target = $region149
    $region148: #{tpu_custom_call.1} parent=1 // pred_region
      %298 = dma.done [#allocation11], 256
    $region149: #{tpu_custom_call.1} parent=1 // pred_fallthru
      _
    %299 = vsyncpa [#allocation11], 1
  %300 = vsyncmov [#allocation5]
  %s301 = vpop.sfrf %300
  %p302 = scmp.eq.s32.totalorder %s301, 0
  %p303 = pneg %p302
  %305 = shalt.err (%p303)
  %s306 = scalar_lea.sflag [#allocation5], 1
  %307 = vsyncmov %s306
  %s308 = vpop.sfrf %307
  %p309 = scmp.eq.s32.totalorder %s308, 0
  %p310 = pneg %p309
  %312 = shalt.err (%p310)
  %s313 = scalar_lea.sflag [#allocation5], 2
  %314 = vsyncmov %s313
  %s315 = vpop.sfrf %314
  %p316 = scmp.eq.s32.totalorder %s315, 0
  %p317 = pneg %p316
  %319 = shalt.err (%p317)

</llo_original>
